<compile_context>
chip_gen: v7x
topology: tpu7x:2x2x1
jax: 0.10.0
libtpu: 0.0.40
codegen_flags: <defaults>
</compile_context>

<pallas_src>
import functools

import jax
import jax.numpy as jnp
from jax.experimental import pallas as pl
from jax.experimental.pallas import tpu as pltpu


def _mha_fused_kernel(x_ref, wqkv_ref, wproj_ref, bproj_ref, mask_ref, o_ref,
                      *, n_heads, head_dim):
    # x_ref    : (B*T, C)   bf16, batch flattened into rows
    # wqkv_ref : (3, C, C)  bf16, [Wq*1/sqrt(D) | Wk | Wv], each (C, H*D)
    # wproj_ref: (C, C)     bf16, pre-transposed so y = x @ w + b
    # bproj_ref: (1, C)     f32 projection bias
    # mask_ref : (B*T, B*T) f32 additive block-diagonal causal mask (0 / -1e30)
    # o_ref    : (B*T, C)   f32 fused output
    x = x_ref[...]                                           # (BT, C) bf16

    # Lane-aligned QKV projections (1/sqrt(D) already folded into Wq).
    q_all = jnp.dot(x, wqkv_ref[0], preferred_element_type=jnp.float32)  # (BT, C)
    k_all = jnp.dot(x, wqkv_ref[1], preferred_element_type=jnp.float32)
    v_all = jnp.dot(x, wqkv_ref[2], preferred_element_type=jnp.float32)

    # Split heads: (BT, C) -> (H, BT, D) with static lane slices + leading-dim
    # stack (no lane/sublane-crossing reshape).
    def split_heads(a):
        parts = [a[:, h * head_dim:(h + 1) * head_dim] for h in range(n_heads)]
        return jnp.stack(parts, axis=0).astype(jnp.bfloat16)

    qh = split_heads(q_all)                                  # (H, BT, D)
    kh = split_heads(k_all)
    vh = split_heads(v_all)

    # Batched scores over all heads in one dot_general (f32 accumulate).
    s = jnp.einsum('hqd,hkd->hqk', qh, kh,
                   preferred_element_type=jnp.float32)       # (H, BT, BT)

    # Block-diagonal causal mask (additive, finite negative -> no NaN risk).
    s = s + mask_ref[...][jnp.newaxis]

    # f32 softmax; denominator reciprocal on the EUP (separate VLIW slot).
    m = jnp.max(s, axis=-1, keepdims=True)
    p = jnp.exp(s - m)
    p = p * pl.reciprocal(jnp.sum(p, axis=-1, keepdims=True), approx=True)

    # Batched P @ V over heads.
    o = jnp.einsum('hqk,hkd->hqd', p.astype(jnp.bfloat16), vh,
                   preferred_element_type=jnp.float32)       # (H, BT, D)

    # Merge heads back to lane-dense (BT, C).
    cat = jnp.concatenate([o[h] for h in range(n_heads)], axis=-1)

    # Fused output projection (weights stay VMEM-resident).
    y = jnp.dot(cat.astype(jnp.bfloat16), wproj_ref[...],
                preferred_element_type=jnp.float32) + bproj_ref[...]
    o_ref[...] = y.astype(o_ref.dtype)


def prepare_mha_params(wq, wk, wv, w_proj, b_proj):
    """One-time static weight preprocessing (hoisted out of the forward path).

    wq/wk/wv : (H, D, C) torch nn.Linear(C, D) weights per head
    w_proj   : (C, C)    torch nn.Linear(C, C) weight
    b_proj   : (C,)      projection bias
    """
    H, D, C = wq.shape
    scale = 1.0 / jnp.sqrt(jnp.float32(D))

    def stack(w):  # (H, D, C) -> (C, H*D): x @ stack(w) == per-head x @ w_h.T
        return jnp.transpose(w, (2, 0, 1)).reshape(C, H * D)

    wqkv = jnp.stack([stack(wq) * scale, stack(wk), stack(wv)], axis=0)  # (3,C,C)
    return (wqkv.astype(jnp.bfloat16),
            jnp.transpose(w_proj).astype(jnp.bfloat16),                 # (C, C)
            b_proj.reshape(1, C).astype(jnp.float32))


def build_causal_mask(batch, seq_len):
    """Additive block-diagonal causal mask over flattened (B*T) rows (static)."""
    n = batch * seq_len
    row = jnp.arange(n)[:, None]
    col = jnp.arange(n)[None, :]
    allowed = (col <= row) & ((row // seq_len) == (col // seq_len))
    return jnp.where(allowed, 0.0, -1e30).astype(jnp.float32)           # (BT, BT)


def multi_head_attention(x, params, mask, n_heads, head_dim):
    """x: (B, T, C) f32; params from prepare_mha_params; mask from build_causal_mask."""
    B, T, C = x.shape
    BT = B * T
    wqkv, wproj_t, bproj = params
    assert n_heads * head_dim == C

    xf = x.reshape(BT, C).astype(jnp.bfloat16)   # flatten batch; bf16 MXU/DMA operand

    kernel = functools.partial(_mha_fused_kernel, n_heads=n_heads, head_dim=head_dim)

    out = pl.pallas_call(
        kernel,
        out_shape=jax.ShapeDtypeStruct((BT, C), jnp.float32),
        grid_spec=pltpu.PrefetchScalarGridSpec(
            num_scalar_prefetch=0,
            grid=(1,),   # whole problem fits one VMEM-resident step at this size
            in_specs=[
                pl.BlockSpec((BT, C), lambda i: (0, 0)),
                pl.BlockSpec((3, C, C), lambda i: (0, 0, 0)),
                pl.BlockSpec((C, C), lambda i: (0, 0)),
                pl.BlockSpec((1, C), lambda i: (0, 0)),
                pl.BlockSpec((BT, BT), lambda i: (0, 0)),
            ],
            out_specs=pl.BlockSpec((BT, C), lambda i: (0, 0)),
        ),
        compiler_params=pltpu.CompilerParams(
            dimension_semantics=("arbitrary",)),
    )(xf, wqkv, wproj_t, bproj, mask)

    return out.reshape(B, T, C)


def _reference(x, wq, wk, wv, w_proj, b_proj):
    # pure-JAX f32 reference matching the PyTorch module semantics
    B, T, C = x.shape
    H, D, _ = wq.shape
    mask = jnp.tril(jnp.ones((T, T), dtype=bool))
    outs = []
    for h in range(H):
        q = x @ wq[h].T
        k = x @ wk[h].T
        v = x @ wv[h].T
        s = (q @ jnp.swapaxes(k, -1, -2)) / jnp.sqrt(jnp.float32(D))
        s = jnp.where(mask, s, -jnp.inf)
        p = jax.nn.softmax(s, axis=-1)
        outs.append(p @ v)
    cat = jnp.concatenate(outs, axis=-1)
    return cat @ w_proj.T + b_proj


if __name__ == "__main__":
    # config: n_embed=32, n_heads=4, head_size=8, dropout=0.0 (eval), T=8, B=2
    B, T, C, H = 2, 8, 32, 4
    D = C // H

    key = jax.random.PRNGKey(0)
    kx, kq, kk, kv, kw, kb = jax.random.split(key, 6)

    x = jax.random.normal(kx, (B, T, C), dtype=jnp.float32)
    # per-head nn.Linear(C, D, bias=False) weight is (D, C)
    wq = jax.random.normal(kq, (H, D, C), dtype=jnp.float32) * 0.1
    wk = jax.random.normal(kk, (H, D, C), dtype=jnp.float32) * 0.1
    wv = jax.random.normal(kv, (H, D, C), dtype=jnp.float32) * 0.1
    # nn.Linear(C, C) weight is (C, C)
    w_proj = jax.random.normal(kw, (C, C), dtype=jnp.float32) * 0.1
    b_proj = jax.random.normal(kb, (C,), dtype=jnp.float32) * 0.1

    # Static preprocessing done once (not on the per-forward path).
    params = prepare_mha_params(wq, wk, wv, w_proj, b_proj)
    mask = build_causal_mask(B, T)

    out = multi_head_attention(x, params, mask, n_heads=H, head_dim=D)
    out = jax.block_until_ready(out)

    ref = _reference(x, wq, wk, wv, w_proj, b_proj)
    assert out.shape == (B, T, C)
    # bf16 MXU operands + approx reciprocal need a looser tolerance than f32 1e-4
    assert jnp.allclose(out, ref, atol=3e-2, rtol=3e-2), "mismatch vs reference"

    print("KERNEL_OK")
</pallas_src>

<mosaic_0001>
module attributes {stable_mosaic.version = 11 : i64} {
  func.func @_mha_fused_kernel(%arg0: i32, %arg1: memref<16x32xbf16, #tpu.memory_space<vmem>>, %arg2: memref<3x32x32xbf16, #tpu.memory_space<vmem>>, %arg3: memref<32x32xbf16, #tpu.memory_space<vmem>>, %arg4: memref<1x32xf32, #tpu.memory_space<vmem>>, %arg5: memref<16x16xf32, #tpu.memory_space<vmem>>, %arg6: memref<16x32xf32, #tpu.memory_space<vmem>>) attributes {dimension_semantics = [#tpu.dimension_semantics<arbitrary>], iteration_bounds = array<i64: 1>, scalar_prefetch = 0 : i64, scratch_operands = 0 : i64, tpu.core_type = #tpu.core_type<tc>, window_params = [{pipeline_mode = #tpu.pipeline_mode<synchronous>, transform_indices = @transform_0, window_bounds = array<i64: 16, 32>}, {pipeline_mode = #tpu.pipeline_mode<synchronous>, transform_indices = @transform_1, window_bounds = array<i64: 3, 32, 32>}, {pipeline_mode = #tpu.pipeline_mode<synchronous>, transform_indices = @transform_2, window_bounds = array<i64: 32, 32>}, {pipeline_mode = #tpu.pipeline_mode<synchronous>, transform_indices = @transform_3, window_bounds = array<i64: 1, 32>}, {pipeline_mode = #tpu.pipeline_mode<synchronous>, transform_indices = @transform_4, window_bounds = array<i64: 16, 16>}, {pipeline_mode = #tpu.pipeline_mode<synchronous>, transform_indices = @transform_5, window_bounds = array<i64: 16, 32>}]} {
    %c0 = arith.constant 0 : index
    %c0_0 = arith.constant 0 : index
    %0 = vector.load %arg1[%c0, %c0_0] : memref<16x32xbf16, #tpu.memory_space<vmem>>, vector<16x32xbf16>
    %c0_1 = arith.constant 0 : index
    %c0_2 = arith.constant 0 : index
    %c0_3 = arith.constant 0 : index
    %1 = vector.load %arg2[%c0_1, %c0_2, %c0_3] : memref<3x32x32xbf16, #tpu.memory_space<vmem>>, vector<1x32x32xbf16>
    %2 = vector.shape_cast %1 : vector<1x32x32xbf16> to vector<32x32xbf16>
    %cst = arith.constant dense<0.000000e+00> : vector<16x32xf32>
    %3 = tpu.matmul %0, %2, %cst {dimension_numbers = #tpu.dot_dimension_numbers<[1], [0], [0], [1], [0, 0, 1, 1], [], []>} : vector<16x32xbf16>, vector<32x32xbf16>, vector<16x32xf32> -> vector<16x32xf32>
    %c1 = arith.constant 1 : index
    %c0_4 = arith.constant 0 : index
    %c0_5 = arith.constant 0 : index
    %4 = vector.load %arg2[%c1, %c0_4, %c0_5] : memref<3x32x32xbf16, #tpu.memory_space<vmem>>, vector<1x32x32xbf16>
    %5 = vector.shape_cast %4 : vector<1x32x32xbf16> to vector<32x32xbf16>
    %cst_6 = arith.constant dense<0.000000e+00> : vector<16x32xf32>
    %6 = tpu.matmul %0, %5, %cst_6 {dimension_numbers = #tpu.dot_dimension_numbers<[1], [0], [0], [1], [0, 0, 1, 1], [], []>} : vector<16x32xbf16>, vector<32x32xbf16>, vector<16x32xf32> -> vector<16x32xf32>
    %c2 = arith.constant 2 : index
    %c0_7 = arith.constant 0 : index
    %c0_8 = arith.constant 0 : index
    %7 = vector.load %arg2[%c2, %c0_7, %c0_8] : memref<3x32x32xbf16, #tpu.memory_space<vmem>>, vector<1x32x32xbf16>
    %8 = vector.shape_cast %7 : vector<1x32x32xbf16> to vector<32x32xbf16>
    %cst_9 = arith.constant dense<0.000000e+00> : vector<16x32xf32>
    %9 = tpu.matmul %0, %8, %cst_9 {dimension_numbers = #tpu.dot_dimension_numbers<[1], [0], [0], [1], [0, 0, 1, 1], [], []>} : vector<16x32xbf16>, vector<32x32xbf16>, vector<16x32xf32> -> vector<16x32xf32>
    %10 = vector.extract_strided_slice %3 {offsets = [0, 0], sizes = [16, 8], strides = [1, 1]} : vector<16x32xf32> to vector<16x8xf32>
    %11 = vector.extract_strided_slice %3 {offsets = [0, 8], sizes = [16, 8], strides = [1, 1]} : vector<16x32xf32> to vector<16x8xf32>
    %12 = vector.extract_strided_slice %3 {offsets = [0, 16], sizes = [16, 8], strides = [1, 1]} : vector<16x32xf32> to vector<16x8xf32>
    %13 = vector.extract_strided_slice %3 {offsets = [0, 24], sizes = [16, 8], strides = [1, 1]} : vector<16x32xf32> to vector<16x8xf32>
    %14 = vector.shape_cast %10 : vector<16x8xf32> to vector<1x16x8xf32>
    %15 = vector.shape_cast %11 : vector<16x8xf32> to vector<1x16x8xf32>
    %16 = vector.shape_cast %12 : vector<16x8xf32> to vector<1x16x8xf32>
    %17 = vector.shape_cast %13 : vector<16x8xf32> to vector<1x16x8xf32>
    %18 = tpu.concatenate %14, %15, %16, %17 in 0 : vector<1x16x8xf32>, vector<1x16x8xf32>, vector<1x16x8xf32>, vector<1x16x8xf32> -> vector<4x16x8xf32>
    %19 = arith.truncf %18 : vector<4x16x8xf32> to vector<4x16x8xbf16>
    %20 = vector.extract_strided_slice %6 {offsets = [0, 0], sizes = [16, 8], strides = [1, 1]} : vector<16x32xf32> to vector<16x8xf32>
    %21 = vector.extract_strided_slice %6 {offsets = [0, 8], sizes = [16, 8], strides = [1, 1]} : vector<16x32xf32> to vector<16x8xf32>
    %22 = vector.extract_strided_slice %6 {offsets = [0, 16], sizes = [16, 8], strides = [1, 1]} : vector<16x32xf32> to vector<16x8xf32>
    %23 = vector.extract_strided_slice %6 {offsets = [0, 24], sizes = [16, 8], strides = [1, 1]} : vector<16x32xf32> to vector<16x8xf32>
    %24 = vector.shape_cast %20 : vector<16x8xf32> to vector<1x16x8xf32>
    %25 = vector.shape_cast %21 : vector<16x8xf32> to vector<1x16x8xf32>
    %26 = vector.shape_cast %22 : vector<16x8xf32> to vector<1x16x8xf32>
    %27 = vector.shape_cast %23 : vector<16x8xf32> to vector<1x16x8xf32>
    %28 = tpu.concatenate %24, %25, %26, %27 in 0 : vector<1x16x8xf32>, vector<1x16x8xf32>, vector<1x16x8xf32>, vector<1x16x8xf32> -> vector<4x16x8xf32>
    %29 = arith.truncf %28 : vector<4x16x8xf32> to vector<4x16x8xbf16>
    %30 = vector.extract_strided_slice %9 {offsets = [0, 0], sizes = [16, 8], strides = [1, 1]} : vector<16x32xf32> to vector<16x8xf32>
    %31 = vector.extract_strided_slice %9 {offsets = [0, 8], sizes = [16, 8], strides = [1, 1]} : vector<16x32xf32> to vector<16x8xf32>
    %32 = vector.extract_strided_slice %9 {offsets = [0, 16], sizes = [16, 8], strides = [1, 1]} : vector<16x32xf32> to vector<16x8xf32>
    %33 = vector.extract_strided_slice %9 {offsets = [0, 24], sizes = [16, 8], strides = [1, 1]} : vector<16x32xf32> to vector<16x8xf32>
    %34 = vector.shape_cast %30 : vector<16x8xf32> to vector<1x16x8xf32>
    %35 = vector.shape_cast %31 : vector<16x8xf32> to vector<1x16x8xf32>
    %36 = vector.shape_cast %32 : vector<16x8xf32> to vector<1x16x8xf32>
    %37 = vector.shape_cast %33 : vector<16x8xf32> to vector<1x16x8xf32>
    %38 = tpu.concatenate %34, %35, %36, %37 in 0 : vector<1x16x8xf32>, vector<1x16x8xf32>, vector<1x16x8xf32>, vector<1x16x8xf32> -> vector<4x16x8xf32>
    %39 = arith.truncf %38 : vector<4x16x8xf32> to vector<4x16x8xbf16>
    "tpu.trace_start"() <{level = 10 : i32, message = "hqd,hkd->hqk"}> : () -> ()
    %cst_10 = arith.constant dense<0.000000e+00> : vector<4x16x16xf32>
    %40 = tpu.matmul %19, %29, %cst_10 {dimension_numbers = #tpu.dot_dimension_numbers<[2], [2], [1], [1], [0, 0, 0, 1, 1, 1], [0], [0]>} : vector<4x16x8xbf16>, vector<4x16x8xbf16>, vector<4x16x16xf32> -> vector<4x16x16xf32>
    "tpu.trace_stop"() : () -> ()
    %c0_11 = arith.constant 0 : index
    %c0_12 = arith.constant 0 : index
    %41 = vector.load %arg5[%c0_11, %c0_12] : memref<16x16xf32, #tpu.memory_space<vmem>>, vector<16x16xf32>
    %42 = vector.shape_cast %41 : vector<16x16xf32> to vector<1x16x16xf32>
    %43 = vector.broadcast %42 : vector<1x16x16xf32> to vector<4x16x16xf32>
    %44 = arith.addf %40, %43 : vector<4x16x16xf32>
    %cst_13 = arith.constant dense<0xFF800000> : vector<4x16xf32>
    %45 = vector.multi_reduction <maximumf>, %44, %cst_13 [2] : vector<4x16x16xf32> to vector<4x16xf32>
    %46 = vector.shape_cast %45 : vector<4x16xf32> to vector<4x16x1xf32>
    %47 = vector.broadcast %46 : vector<4x16x1xf32> to vector<4x16x16xf32>
    %48 = arith.subf %44, %47 : vector<4x16x16xf32>
    %49 = math.exp %48 : vector<4x16x16xf32>
    %cst_14 = arith.constant dense<0.000000e+00> : vector<4x16xf32>
    %50 = vector.multi_reduction <add>, %49, %cst_14 [2] : vector<4x16x16xf32> to vector<4x16xf32>
    %51 = vector.shape_cast %50 : vector<4x16xf32> to vector<4x16x1xf32>
    %52 = tpu.reciprocal %51 {approx = true} : vector<4x16x1xf32> -> vector<4x16x1xf32>
    %53 = vector.broadcast %52 : vector<4x16x1xf32> to vector<4x16x16xf32>
    %54 = arith.mulf %49, %53 : vector<4x16x16xf32>
    %55 = arith.truncf %54 : vector<4x16x16xf32> to vector<4x16x16xbf16>
    "tpu.trace_start"() <{level = 10 : i32, message = "hqk,hkd->hqd"}> : () -> ()
    %cst_15 = arith.constant dense<0.000000e+00> : vector<4x16x8xf32>
    %56 = tpu.matmul %55, %39, %cst_15 {dimension_numbers = #tpu.dot_dimension_numbers<[2], [1], [1], [2], [0, 0, 0, 1, 1, 2], [0], [0]>} : vector<4x16x16xbf16>, vector<4x16x8xbf16>, vector<4x16x8xf32> -> vector<4x16x8xf32>
    "tpu.trace_stop"() : () -> ()
    %57 = vector.extract_strided_slice %56 {offsets = [0, 0, 0], sizes = [1, 16, 8], strides = [1, 1, 1]} : vector<4x16x8xf32> to vector<1x16x8xf32>
    %58 = vector.shape_cast %57 : vector<1x16x8xf32> to vector<16x8xf32>
    %59 = vector.extract_strided_slice %56 {offsets = [1, 0, 0], sizes = [1, 16, 8], strides = [1, 1, 1]} : vector<4x16x8xf32> to vector<1x16x8xf32>
    %60 = vector.shape_cast %59 : vector<1x16x8xf32> to vector<16x8xf32>
    %61 = vector.extract_strided_slice %56 {offsets = [2, 0, 0], sizes = [1, 16, 8], strides = [1, 1, 1]} : vector<4x16x8xf32> to vector<1x16x8xf32>
    %62 = vector.shape_cast %61 : vector<1x16x8xf32> to vector<16x8xf32>
    %63 = vector.extract_strided_slice %56 {offsets = [3, 0, 0], sizes = [1, 16, 8], strides = [1, 1, 1]} : vector<4x16x8xf32> to vector<1x16x8xf32>
    %64 = vector.shape_cast %63 : vector<1x16x8xf32> to vector<16x8xf32>
    %65 = tpu.concatenate %58, %60, %62, %64 in 1 : vector<16x8xf32>, vector<16x8xf32>, vector<16x8xf32>, vector<16x8xf32> -> vector<16x32xf32>
    %66 = arith.truncf %65 : vector<16x32xf32> to vector<16x32xbf16>
    %c0_16 = arith.constant 0 : index
    %c0_17 = arith.constant 0 : index
    %67 = vector.load %arg3[%c0_16, %c0_17] : memref<32x32xbf16, #tpu.memory_space<vmem>>, vector<32x32xbf16>
    %cst_18 = arith.constant dense<0.000000e+00> : vector<16x32xf32>
    %68 = tpu.matmul %66, %67, %cst_18 {dimension_numbers = #tpu.dot_dimension_numbers<[1], [0], [0], [1], [0, 0, 1, 1], [], []>} : vector<16x32xbf16>, vector<32x32xbf16>, vector<16x32xf32> -> vector<16x32xf32>
    %c0_19 = arith.constant 0 : index
    %c0_20 = arith.constant 0 : index
    %69 = vector.load %arg4[%c0_19, %c0_20] : memref<1x32xf32, #tpu.memory_space<vmem>>, vector<1x32xf32>
    %70 = vector.broadcast %69 : vector<1x32xf32> to vector<16x32xf32>
    %71 = arith.addf %68, %70 : vector<16x32xf32>
    %c0_21 = arith.constant 0 : index
    %c0_22 = arith.constant 0 : index
    %72 = vector.load %arg6[%c0_21, %c0_22] : memref<16x32xf32, #tpu.memory_space<vmem>>, vector<16x32xf32>
    tpu.vector_store %arg6[%c0_21, %c0_22], %71 {strides = array<i32>} : memref<16x32xf32, #tpu.memory_space<vmem>>, vector<16x32xf32>,
    return
  }
  func.func @transform_0(%arg0: i32) -> (i32, i32) {
    %c0_i32 = arith.constant 0 : i32
    %c0_i32_0 = arith.constant 0 : i32
    %c0_i32_1 = arith.constant 0 : i32
    return %c0_i32, %c0_i32_0 : i32, i32
  }
  func.func @transform_1(%arg0: i32) -> (i32, i32, i32) {
    %c0_i32 = arith.constant 0 : i32
    %c0_i32_0 = arith.constant 0 : i32
    %c0_i32_1 = arith.constant 0 : i32
    %c0_i32_2 = arith.constant 0 : i32
    return %c0_i32, %c0_i32_0, %c0_i32_1 : i32, i32, i32
  }
  func.func @transform_2(%arg0: i32) -> (i32, i32) {
    %c0_i32 = arith.constant 0 : i32
    %c0_i32_0 = arith.constant 0 : i32
    %c0_i32_1 = arith.constant 0 : i32
    return %c0_i32, %c0_i32_0 : i32, i32
  }
  func.func @transform_3(%arg0: i32) -> (i32, i32) {
    %c0_i32 = arith.constant 0 : i32
    %c0_i32_0 = arith.constant 0 : i32
    %c0_i32_1 = arith.constant 0 : i32
    return %c0_i32, %c0_i32_0 : i32, i32
  }
  func.func @transform_4(%arg0: i32) -> (i32, i32) {
    %c0_i32 = arith.constant 0 : i32
    %c0_i32_0 = arith.constant 0 : i32
    %c0_i32_1 = arith.constant 0 : i32
    return %c0_i32, %c0_i32_0 : i32, i32
  }
  func.func @transform_5(%arg0: i32) -> (i32, i32) {
    %c0_i32 = arith.constant 0 : i32
    %c0_i32_0 = arith.constant 0 : i32
    %c0_i32_1 = arith.constant 0 : i32
    return %c0_i32, %c0_i32_0 : i32, i32
  }
}

</mosaic_0001>

<llo_original>
// kernel: tpu_custom_call.1
$region0: #{tpu_custom_call.1}
  #allocation0 [shape = 'u32[]', space=smem, size = 0x4, offset = 0x4, fixed_abs, tag = 'smem constant byte address 0x4 - core index']
  #allocation1 [shape = 'u32[144,128]{1,0:T(1,128)}', space=vmem, size = 0x12000, scoped, tag = 'internal scratch']
  %s0 = inlined_call_operand.hbm [shape: bf16[16,32], index: 0, kind: input, shape index: {}]
  %s1 = inlined_call_operand.hbm [shape: bf16[3,32,32], index: 1, kind: input, shape index: {}]
  %s2 = inlined_call_operand.hbm [shape: bf16[32,32], index: 2, kind: input, shape index: {}]
  %s3 = inlined_call_operand.vmem [shape: f32[1,32], index: 3, kind: input, shape index: {}]
  %s4 = inlined_call_operand.hbm [shape: f32[16,16], index: 4, kind: input, shape index: {}]
  %s5 = inlined_call_operand.hbm [shape: f32[16,32], index: 5, kind: output, shape index: {}]
  %s6 = sld [smem:[#allocation0]]
  $region46: #{tpu_custom_call.1} parent=0
    _
  %s8 = ssub.s32 1, %s6
  %s9 = scalar_select 0, %s8, %s6
  $region1: #{tpu_custom_call.1} parent=0
    #allocation2 [shape = 'u8[4096]{0}', space=vmem, size = 0x1000, scoped, tag = 'input window, operand 0, single buffered']
    #allocation3 [shape = 's32[1]{0}', space=sflag, size = 0x4, scoped, tag = 'scoped memory for tpu_custom_call.1']
    #allocation4 [shape = 's32[1]{0}', space=sflag, size = 0x4, scoped, tag = 'scoped memory for tpu_custom_call.1']
    #allocation5 [shape = 'u8[24576]{0}', space=vmem, size = 0x6000, scoped, tag = 'input window, operand 1, single buffered']
    #allocation6 [shape = 's32[1]{0}', space=sflag, size = 0x4, scoped, tag = 'scoped memory for tpu_custom_call.1']
    #allocation7 [shape = 'u8[8192]{0}', space=vmem, size = 0x2000, scoped, tag = 'input window, operand 2, single buffered']
    #allocation8 [shape = 'u8[8192]{0}', space=vmem, size = 0x2000, scoped, tag = 'input window, operand 4, single buffered']
    #allocation9 [shape = 's32[1]{0}', space=sflag, size = 0x4, scoped, tag = 'scoped memory for tpu_custom_call.1']
    #allocation10 [shape = 'u8[8192]{0}', space=vmem, size = 0x2000, scoped, tag = 'output window, operand 0, single buffered']
    %10 = vsyncpa [#allocation3], 0
    %11 = vsyncpa [#allocation6], 0
    %12 = vsyncpa [#allocation9], 0
    %13 = vsyncpa [#allocation4], 0
    // Predicated region
    $region2: #{tpu_custom_call.1} parent=1 // pred_check
      _
    $region3: #{tpu_custom_call.1} parent=1 // pred_check_branch
      %15 = sbr.rel (0) target = $region5
    $region4: #{tpu_custom_call.1} parent=1 // pred_region
      %s17 = ssub.s32 128, 128
      %18 = vsyncadd [#allocation3], %s17
      %s19 = sshll.u32 [#allocation2], 4
      %s20 = int_to_ptr.vmem [resolvable:$true] %s19
      %25 = dma.hbm_to_vmem [thread:$0]  %s0, 128, %s20, [#allocation3], 64, 64, 4
    $region5: #{tpu_custom_call.1} parent=1 // pred_fallthru
      _
    // Predicated region
    $region6: #{tpu_custom_call.1} parent=1 // pred_check
      _
    $region7: #{tpu_custom_call.1} parent=1 // pred_check_branch
      %27 = sbr.rel (0) target = $region9
    $region8: #{tpu_custom_call.1} parent=1 // pred_region
      %s29 = ssub.s32 768, 768
      %30 = vsyncadd [#allocation6], %s29
      %s31 = sshll.u32 [#allocation5], 4
      %s32 = int_to_ptr.vmem [resolvable:$true] %s31
      %37 = dma.hbm_to_vmem [thread:$0]  %s1, 768, %s32, [#allocation6], 64, 64, 4
    $region9: #{tpu_custom_call.1} parent=1 // pred_fallthru
      _
    // Predicated region
    $region10: #{tpu_custom_call.1} parent=1 // pred_check
      _
    $region11: #{tpu_custom_call.1} parent=1 // pred_check_branch
      %39 = sbr.rel (0) target = $region13
    $region12: #{tpu_custom_call.1} parent=1 // pred_region
      %s41 = ssub.s32 256, 256
      %42 = vsyncadd [#allocation6], %s41
      %s43 = sshll.u32 [#allocation7], 4
      %s44 = int_to_ptr.vmem [resolvable:$true] %s43
      %49 = dma.hbm_to_vmem [thread:$0]  %s2, 256, %s44, [#allocation6], 64, 64, 4
    $region13: #{tpu_custom_call.1} parent=1 // pred_fallthru
      _
    // Predicated region
    $region14: #{tpu_custom_call.1} parent=1 // pred_check
      _
    $region15: #{tpu_custom_call.1} parent=1 // pred_check_branch
      %51 = sbr.rel (0) target = $region17
    $region16: #{tpu_custom_call.1} parent=1 // pred_region
      _
    $region17: #{tpu_custom_call.1} parent=1 // pred_fallthru
      _
    // Predicated region
    $region18: #{tpu_custom_call.1} parent=1 // pred_check
      _
    $region19: #{tpu_custom_call.1} parent=1 // pred_check_branch
      %53 = sbr.rel (0) target = $region21
    $region20: #{tpu_custom_call.1} parent=1 // pred_region
      %s55 = ssub.s32 256, 256
      %56 = vsyncadd [#allocation9], %s55
      %s57 = sshll.u32 [#allocation8], 4
      %s58 = int_to_ptr.vmem [resolvable:$true] %s57
      %63 = dma.hbm_to_vmem [thread:$0]  %s4, 256, %s58, [#allocation9], 128, 128, 8
    $region21: #{tpu_custom_call.1} parent=1 // pred_fallthru
      _
    // Predicated region
    $region22: #{tpu_custom_call.1} parent=1 // pred_check
      _
    $region23: #{tpu_custom_call.1} parent=1 // pred_check_branch
      %65 = sbr.rel (0) target = $region25
    $region24: #{tpu_custom_call.1} parent=1 // pred_region
      %66 = dma.done [#allocation3], 128
    $region25: #{tpu_custom_call.1} parent=1 // pred_fallthru
      _
    // Predicated region
    $region26: #{tpu_custom_call.1} parent=1 // pred_check
      _
    $region27: #{tpu_custom_call.1} parent=1 // pred_check_branch
      %68 = sbr.rel (0) target = $region29
    $region28: #{tpu_custom_call.1} parent=1 // pred_region
      %69 = dma.done [#allocation6], 768
    $region29: #{tpu_custom_call.1} parent=1 // pred_fallthru
      _
    // Predicated region
    $region30: #{tpu_custom_call.1} parent=1 // pred_check
      _
    $region31: #{tpu_custom_call.1} parent=1 // pred_check_branch
      %71 = sbr.rel (0) target = $region33
    $region32: #{tpu_custom_call.1} parent=1 // pred_region
      %72 = dma.done [#allocation6], 256
    $region33: #{tpu_custom_call.1} parent=1 // pred_fallthru
      _
    // Predicated region
    $region34: #{tpu_custom_call.1} parent=1 // pred_check
      _
    $region35: #{tpu_custom_call.1} parent=1 // pred_check_branch
      %74 = sbr.rel (0) target = $region37
    $region36: #{tpu_custom_call.1} parent=1 // pred_region
      %75 = dma.done [#allocation9], 256
    $region37: #{tpu_custom_call.1} parent=1 // pred_fallthru
      _
    %v77 = vld [vmem:[#allocation2] sm:$0xf]
    %v78 = vld [vmem:[#allocation2 + $0x4] sm:$0xf]
    %v79 = vld [vmem:[#allocation5] sm:$0xf]
    %v80 = vld [vmem:[#allocation5 + $0x4] sm:$0xf]
    %v81 = vld [vmem:[#allocation5 + $0x8] sm:$0xf]
    %v82 = vld [vmem:[#allocation5 + $0xc] sm:$0xf]
    %v85 = vunpack.c.l.b16 %v77
    %v86 = vunpack.c.l.b16 %v78
    %v87 = vpack.c.b16 %v86, %v85
    %v92 = vunpack.c.l.b16 %v79
    %v93 = vunpack.c.l.b16 %v80
    %v94 = vunpack.c.l.b16 %v81
    %v95 = vunpack.c.l.b16 %v82
    %v96 = vpack.c.b16 %v93, %v92
    %v97 = vpack.c.b16 %v95, %v94
    %vm100 = vcmask 261120
    %v102 = vsel %vm100, %v87, 0
    %104 = vmatprep.subr.bf16.mxu0 0
    %105 = vmatpush1.bf16.msra.mxu0 %v96
    %106 = vmatprep.subr.bf16.mxu0 0
    %107 = vmatpush1.bf16.msra.mxu0 %v97
    %108 = vmatprep.subr.bf16.mxu0 0
    %109 = vmatpush1.bf16.msra.mxu0 0
    %110 = vmatprep.subr.bf16.mxu0 0
    %111 = vmatpush1.bf16.msra.mxu0 0
    %112 = vmatprep.subr.bf16.mxu0 0
    %113 = vmatpush1.bf16.msra.mxu0 0
    %114 = vmatprep.subr.bf16.mxu0 0
    %115 = vmatpush1.bf16.msra.mxu0 0
    %116 = vmatprep.subr.bf16.mxu0 0
    %117 = vmatpush1.bf16.msra.mxu0 0
    %118 = vmatprep.subr.bf16.mxu0 0
    %119 = vmatpush1.bf16.msra.mxu0 0
    %120 = vmatprep.subr.bf16.mxu0 0
    %121 = vmatpush1.bf16.msra.mxu0 0
    %122 = vmatprep.subr.bf16.mxu0 0
    %123 = vmatpush1.bf16.msra.mxu0 0
    %124 = vmatprep.subr.bf16.mxu0 0
    %125 = vmatpush1.bf16.msra.mxu0 0
    %126 = vmatprep.subr.bf16.mxu0 0
    %127 = vmatpush1.bf16.msra.mxu0 0
    %128 = vmatprep.subr.bf16.mxu0 0
    %129 = vmatpush1.bf16.msra.mxu0 0
    %130 = vmatprep.subr.bf16.mxu0 0
    %131 = vmatpush1.bf16.msra.mxu0 0
    %132 = vmatprep.subr.bf16.mxu0 0
    %133 = vmatpush1.bf16.msra.mxu0 0
    %134 = vmatprep.subr.bf16.mxu0 0
    %135 = vmatpush1.bf16.msra.mxu0 0
    %136 = vmatprep.mubr.bf16.mxu0 0
    %137 = vmatmul.mubr.bf16.gmra.mrb[0].mxu0 %v102
    %v138 = vpop.f32.mrb[0].mxu0
    %v139 = vadd.f32 0.0, %v138
    %v140 = vpop.f32.mrb[0].mxu0
    %v141 = vpop.f32.mrb[0].mxu0
    %v142 = vadd.f32 0.0, %v141
    %v143 = vpop.f32.mrb[0].mxu0
    %144 = vdwg.mxu0
    %s145 = scalar_lea.vmem [#allocation5], 16
    %v146 = vld [vmem:[%s145] sm:$0xf]
    %v147 = vld [vmem:[%s145 + $0x4] sm:$0xf]
    %v148 = vld [vmem:[%s145 + $0x8] sm:$0xf]
    %v149 = vld [vmem:[%s145 + $0xc] sm:$0xf]
    %v154 = vunpack.c.l.b16 %v146
    %v155 = vunpack.c.l.b16 %v147
    %v156 = vunpack.c.l.b16 %v148
    %v157 = vunpack.c.l.b16 %v149
    %v158 = vpack.c.b16 %v155, %v154
    %v159 = vpack.c.b16 %v157, %v156
    %162 = vmatprep.subr.bf16.mxu0 0
    %163 = vmatpush1.bf16.msra.mxu0 %v158
    %164 = vmatprep.subr.bf16.mxu0 0
    %165 = vmatpush1.bf16.msra.mxu0 %v159
    %166 = vmatprep.subr.bf16.mxu0 0
    %167 = vmatpush1.bf16.msra.mxu0 0
    %168 = vmatprep.subr.bf16.mxu0 0
    %169 = vmatpush1.bf16.msra.mxu0 0
    %170 = vmatprep.subr.bf16.mxu0 0
    %171 = vmatpush1.bf16.msra.mxu0 0
    %172 = vmatprep.subr.bf16.mxu0 0
    %173 = vmatpush1.bf16.msra.mxu0 0
    %174 = vmatprep.subr.bf16.mxu0 0
    %175 = vmatpush1.bf16.msra.mxu0 0
    %176 = vmatprep.subr.bf16.mxu0 0
    %177 = vmatpush1.bf16.msra.mxu0 0
    %178 = vmatprep.subr.bf16.mxu0 0
    %179 = vmatpush1.bf16.msra.mxu0 0
    %180 = vmatprep.subr.bf16.mxu0 0
    %181 = vmatpush1.bf16.msra.mxu0 0
    %182 = vmatprep.subr.bf16.mxu0 0
    %183 = vmatpush1.bf16.msra.mxu0 0
    %184 = vmatprep.subr.bf16.mxu0 0
    %185 = vmatpush1.bf16.msra.mxu0 0
    %186 = vmatprep.subr.bf16.mxu0 0
    %187 = vmatpush1.bf16.msra.mxu0 0
    %188 = vmatprep.subr.bf16.mxu0 0
    %189 = vmatpush1.bf16.msra.mxu0 0
    %190 = vmatprep.subr.bf16.mxu0 0
    %191 = vmatpush1.bf16.msra.mxu0 0
    %192 = vmatprep.subr.bf16.mxu0 0
    %193 = vmatpush1.bf16.msra.mxu0 0
    %194 = vmatprep.mubr.bf16.mxu0 0
    %195 = vmatmul.mubr.bf16.gmra.mrb[0].mxu0 %v102
    %v196 = vpop.f32.mrb[0].mxu0
    %v197 = vadd.f32 0.0, %v196
    %v198 = vpop.f32.mrb[0].mxu0
    %v199 = vpop.f32.mrb[0].mxu0
    %v200 = vadd.f32 0.0, %v199
    %v201 = vpop.f32.mrb[0].mxu0
    %202 = vdwg.mxu0
    %s203 = scalar_lea.vmem [#allocation5], 32
    %v204 = vld [vmem:[%s203] sm:$0xf]
    %v205 = vld [vmem:[%s203 + $0x4] sm:$0xf]
    %v206 = vld [vmem:[%s203 + $0x8] sm:$0xf]
    %v207 = vld [vmem:[%s203 + $0xc] sm:$0xf]
    %v212 = vunpack.c.l.b16 %v204
    %v213 = vunpack.c.l.b16 %v205
    %v214 = vunpack.c.l.b16 %v206
    %v215 = vunpack.c.l.b16 %v207
    %v216 = vpack.c.b16 %v213, %v212
    %v217 = vpack.c.b16 %v215, %v214
    %220 = vmatprep.subr.bf16.mxu0 0
    %221 = vmatpush1.bf16.msra.mxu0 %v216
    %222 = vmatprep.subr.bf16.mxu0 0
    %223 = vmatpush1.bf16.msra.mxu0 %v217
    %224 = vmatprep.subr.bf16.mxu0 0
    %225 = vmatpush1.bf16.msra.mxu0 0
    %226 = vmatprep.subr.bf16.mxu0 0
    %227 = vmatpush1.bf16.msra.mxu0 0
    %228 = vmatprep.subr.bf16.mxu0 0
    %229 = vmatpush1.bf16.msra.mxu0 0
    %230 = vmatprep.subr.bf16.mxu0 0
    %231 = vmatpush1.bf16.msra.mxu0 0
    %232 = vmatprep.subr.bf16.mxu0 0
    %233 = vmatpush1.bf16.msra.mxu0 0
    %234 = vmatprep.subr.bf16.mxu0 0
    %235 = vmatpush1.bf16.msra.mxu0 0
    %236 = vmatprep.subr.bf16.mxu0 0
    %237 = vmatpush1.bf16.msra.mxu0 0
    %238 = vmatprep.subr.bf16.mxu0 0
    %239 = vmatpush1.bf16.msra.mxu0 0
    %240 = vmatprep.subr.bf16.mxu0 0
    %241 = vmatpush1.bf16.msra.mxu0 0
    %242 = vmatprep.subr.bf16.mxu0 0
    %243 = vmatpush1.bf16.msra.mxu0 0
    %244 = vmatprep.subr.bf16.mxu0 0
    %245 = vmatpush1.bf16.msra.mxu0 0
    %246 = vmatprep.subr.bf16.mxu0 0
    %247 = vmatpush1.bf16.msra.mxu0 0
    %248 = vmatprep.subr.bf16.mxu0 0
    %249 = vmatpush1.bf16.msra.mxu0 0
    %250 = vmatprep.subr.bf16.mxu0 0
    %251 = vmatpush1.bf16.msra.mxu0 0
    %252 = vmatprep.mubr.bf16.mxu0 0
    %253 = vmatmul.mubr.bf16.gmra.mrb[0].mxu0 %v102
    %v254 = vpop.f32.mrb[0].mxu0
    %v255 = vadd.f32 0.0, %v254
    %v256 = vpop.f32.mrb[0].mxu0
    %v257 = vpop.f32.mrb[0].mxu0
    %v258 = vadd.f32 0.0, %v257
    %v259 = vpop.f32.mrb[0].mxu0
    %260 = vdwg.mxu0
    %263 = vrot.lane.b32.xlu0 %v139, 120
    %v264 = vpop.permute.xlu0 %263
    %265 = vrot.lane.b32.xlu0 %v142, 120
    %v266 = vpop.permute.xlu0 %265
    %269 = vrot.lane.b32.xlu0 %v139, 112
    %v270 = vpop.permute.xlu0 %269
    %271 = vrot.lane.b32.xlu0 %v142, 112
    %v272 = vpop.permute.xlu0 %271
    %275 = vrot.lane.b32.xlu0 %v139, 104
    %v276 = vpop.permute.xlu0 %275
    %277 = vrot.lane.b32.xlu0 %v142, 104
    %v278 = vpop.permute.xlu0 %277
    %v281 = vpack.c.bf16 %v142, %v139
    %v282 = vpack.c.bf16 %v266, %v264
    %v283 = vpack.c.bf16 %v272, %v270
    %v284 = vpack.c.bf16 %v278, %v276
    %287 = vrot.lane.b32.xlu0 %v197, 120
    %v288 = vpop.permute.xlu0 %287
    %289 = vrot.lane.b32.xlu0 %v200, 120
    %v290 = vpop.permute.xlu0 %289
    %293 = vrot.lane.b32.xlu0 %v197, 112
    %v294 = vpop.permute.xlu0 %293
    %295 = vrot.lane.b32.xlu0 %v200, 112
    %v296 = vpop.permute.xlu0 %295
    %299 = vrot.lane.b32.xlu0 %v197, 104
    %v300 = vpop.permute.xlu0 %299
    %301 = vrot.lane.b32.xlu0 %v200, 104
    %v302 = vpop.permute.xlu0 %301
    %v305 = vpack.c.bf16 %v200, %v197
    %v306 = vpack.c.bf16 %v290, %v288
    %v307 = vpack.c.bf16 %v296, %v294
    %v308 = vpack.c.bf16 %v302, %v300
    %311 = vrot.lane.b32.xlu0 %v255, 120
    %v312 = vpop.permute.xlu0 %311
    %313 = vrot.lane.b32.xlu0 %v258, 120
    %v314 = vpop.permute.xlu0 %313
    %317 = vrot.lane.b32.xlu0 %v255, 112
    %v318 = vpop.permute.xlu0 %317
    %319 = vrot.lane.b32.xlu0 %v258, 112
    %v320 = vpop.permute.xlu0 %319
    %323 = vrot.lane.b32.xlu0 %v255, 104
    %v324 = vpop.permute.xlu0 %323
    %325 = vrot.lane.b32.xlu0 %v258, 104
    %v326 = vpop.permute.xlu0 %325
    %v329 = vpack.c.bf16 %v258, %v255
    %v330 = vpack.c.bf16 %v314, %v312
    %v331 = vpack.c.bf16 %v320, %v318
    %v332 = vpack.c.bf16 %v326, %v324
    %v333 = vld [vmem:[#allocation8] sm:$0xff]
    %v334 = vld [vmem:[#allocation8 + $0x8] sm:$0xff]
    %vm335 = vcmask 64512
    %v337 = vsel %vm335, %v281, 0
    %v340 = vsel %vm335, %v305, 0
    %342 = vmatprep.subr.bf16.mxu0 0
    %343 = vmatpush1.bf16.xpose.msra.mxu0 %v340
    %344 = vmatprep.subr.bf16.mxu0 0
    %345 = vmatpush1.bf16.xpose.msra.mxu0 0
    %346 = vmatprep.subr.bf16.mxu0 0
    %347 = vmatpush1.bf16.xpose.msra.mxu0 0
    %348 = vmatprep.subr.bf16.mxu0 0
    %349 = vmatpush1.bf16.xpose.msra.mxu0 0
    %350 = vmatprep.subr.bf16.mxu0 0
    %351 = vmatpush1.bf16.xpose.msra.mxu0 0
    %352 = vmatprep.subr.bf16.mxu0 0
    %353 = vmatpush1.bf16.xpose.msra.mxu0 0
    %354 = vmatprep.subr.bf16.mxu0 0
    %355 = vmatpush1.bf16.xpose.msra.mxu0 0
    %356 = vmatprep.subr.bf16.mxu0 0
    %357 = vmatpush1.bf16.xpose.msra.mxu0 0
    %358 = vmatprep.subr.bf16.mxu0 0
    %359 = vmatpush1.bf16.xpose.msra.mxu0 0
    %360 = vmatprep.subr.bf16.mxu0 0
    %361 = vmatpush1.bf16.xpose.msra.mxu0 0
    %362 = vmatprep.subr.bf16.mxu0 0
    %363 = vmatpush1.bf16.xpose.msra.mxu0 0
    %364 = vmatprep.subr.bf16.mxu0 0
    %365 = vmatpush1.bf16.xpose.msra.mxu0 0
    %366 = vmatprep.subr.bf16.mxu0 0
    %367 = vmatpush1.bf16.xpose.msra.mxu0 0
    %368 = vmatprep.subr.bf16.mxu0 0
    %369 = vmatpush1.bf16.xpose.msra.mxu0 0
    %370 = vmatprep.subr.bf16.mxu0 0
    %371 = vmatpush1.bf16.xpose.msra.mxu0 0
    %372 = vmatprep.subr.bf16.mxu0 0
    %373 = vmatpush1.bf16.xpose.msra.mxu0 0
    %374 = vmatprep.mubr.bf16.mxu0 0
    %375 = vmatmul.mubr.bf16.gmra.mrb[0].mxu0 %v337
    %v376 = vpop.f32.mrb[0].mxu0
    %v377 = vadd.f32 %v333, %v376
    %v378 = vpop.f32.mrb[0].mxu0
    %v379 = vpop.f32.mrb[0].mxu0
    %v380 = vadd.f32 %v334, %v379
    %v381 = vpop.f32.mrb[0].mxu0
    %382 = vdwg.mxu0
    %v384 = vsel %vm335, %v282, 0
    %v387 = vsel %vm335, %v306, 0
    %389 = vmatprep.subr.bf16.mxu0 0
    %390 = vmatpush1.bf16.xpose.msra.mxu0 %v387
    %391 = vmatprep.subr.bf16.mxu0 0
    %392 = vmatpush1.bf16.xpose.msra.mxu0 0
    %393 = vmatprep.subr.bf16.mxu0 0
    %394 = vmatpush1.bf16.xpose.msra.mxu0 0
    %395 = vmatprep.subr.bf16.mxu0 0
    %396 = vmatpush1.bf16.xpose.msra.mxu0 0
    %397 = vmatprep.subr.bf16.mxu0 0
    %398 = vmatpush1.bf16.xpose.msra.mxu0 0
    %399 = vmatprep.subr.bf16.mxu0 0
    %400 = vmatpush1.bf16.xpose.msra.mxu0 0
    %401 = vmatprep.subr.bf16.mxu0 0
    %402 = vmatpush1.bf16.xpose.msra.mxu0 0
    %403 = vmatprep.subr.bf16.mxu0 0
    %404 = vmatpush1.bf16.xpose.msra.mxu0 0
    %405 = vmatprep.subr.bf16.mxu0 0
    %406 = vmatpush1.bf16.xpose.msra.mxu0 0
    %407 = vmatprep.subr.bf16.mxu0 0
    %408 = vmatpush1.bf16.xpose.msra.mxu0 0
    %409 = vmatprep.subr.bf16.mxu0 0
    %410 = vmatpush1.bf16.xpose.msra.mxu0 0
    %411 = vmatprep.subr.bf16.mxu0 0
    %412 = vmatpush1.bf16.xpose.msra.mxu0 0
    %413 = vmatprep.subr.bf16.mxu0 0
    %414 = vmatpush1.bf16.xpose.msra.mxu0 0
    %415 = vmatprep.subr.bf16.mxu0 0
    %416 = vmatpush1.bf16.xpose.msra.mxu0 0
    %417 = vmatprep.subr.bf16.mxu0 0
    %418 = vmatpush1.bf16.xpose.msra.mxu0 0
    %419 = vmatprep.subr.bf16.mxu0 0
    %420 = vmatpush1.bf16.xpose.msra.mxu0 0
    %421 = vmatprep.mubr.bf16.mxu0 0
    %422 = vmatmul.mubr.bf16.gmra.mrb[0].mxu0 %v384
    %v423 = vpop.f32.mrb[0].mxu0
    %v424 = vadd.f32 %v333, %v423
    %v425 = vpop.f32.mrb[0].mxu0
    %v426 = vpop.f32.mrb[0].mxu0
    %v427 = vadd.f32 %v334, %v426
    %v428 = vpop.f32.mrb[0].mxu0
    %429 = vdwg.mxu0
    %v431 = vsel %vm335, %v283, 0
    %v434 = vsel %vm335, %v307, 0
    %436 = vmatprep.subr.bf16.mxu0 0
    %437 = vmatpush1.bf16.xpose.msra.mxu0 %v434
    %438 = vmatprep.subr.bf16.mxu0 0
    %439 = vmatpush1.bf16.xpose.msra.mxu0 0
    %440 = vmatprep.subr.bf16.mxu0 0
    %441 = vmatpush1.bf16.xpose.msra.mxu0 0
    %442 = vmatprep.subr.bf16.mxu0 0
    %443 = vmatpush1.bf16.xpose.msra.mxu0 0
    %444 = vmatprep.subr.bf16.mxu0 0
    %445 = vmatpush1.bf16.xpose.msra.mxu0 0
    %446 = vmatprep.subr.bf16.mxu0 0
    %447 = vmatpush1.bf16.xpose.msra.mxu0 0
    %448 = vmatprep.subr.bf16.mxu0 0
    %449 = vmatpush1.bf16.xpose.msra.mxu0 0
    %450 = vmatprep.subr.bf16.mxu0 0
    %451 = vmatpush1.bf16.xpose.msra.mxu0 0
    %452 = vmatprep.subr.bf16.mxu0 0
    %453 = vmatpush1.bf16.xpose.msra.mxu0 0
    %454 = vmatprep.subr.bf16.mxu0 0
    %455 = vmatpush1.bf16.xpose.msra.mxu0 0
    %456 = vmatprep.subr.bf16.mxu0 0
    %457 = vmatpush1.bf16.xpose.msra.mxu0 0
    %458 = vmatprep.subr.bf16.mxu0 0
    %459 = vmatpush1.bf16.xpose.msra.mxu0 0
    %460 = vmatprep.subr.bf16.mxu0 0
    %461 = vmatpush1.bf16.xpose.msra.mxu0 0
    %462 = vmatprep.subr.bf16.mxu0 0
    %463 = vmatpush1.bf16.xpose.msra.mxu0 0
    %464 = vmatprep.subr.bf16.mxu0 0
    %465 = vmatpush1.bf16.xpose.msra.mxu0 0
    %466 = vmatprep.subr.bf16.mxu0 0
    %467 = vmatpush1.bf16.xpose.msra.mxu0 0
    %468 = vmatprep.mubr.bf16.mxu0 0
    %469 = vmatmul.mubr.bf16.gmra.mrb[0].mxu0 %v431
    %v470 = vpop.f32.mrb[0].mxu0
    %v471 = vadd.f32 %v333, %v470
    %v472 = vpop.f32.mrb[0].mxu0
    %v473 = vpop.f32.mrb[0].mxu0
    %v474 = vadd.f32 %v334, %v473
    %v475 = vpop.f32.mrb[0].mxu0
    %476 = vdwg.mxu0
    %v478 = vsel %vm335, %v284, 0
    %v481 = vsel %vm335, %v308, 0
    %483 = vmatprep.subr.bf16.mxu0 0
    %484 = vmatpush1.bf16.xpose.msra.mxu0 %v481
    %485 = vmatprep.subr.bf16.mxu0 0
    %486 = vmatpush1.bf16.xpose.msra.mxu0 0
    %487 = vmatprep.subr.bf16.mxu0 0
    %488 = vmatpush1.bf16.xpose.msra.mxu0 0
    %489 = vmatprep.subr.bf16.mxu0 0
    %490 = vmatpush1.bf16.xpose.msra.mxu0 0
    %491 = vmatprep.subr.bf16.mxu0 0
    %492 = vmatpush1.bf16.xpose.msra.mxu0 0
    %493 = vmatprep.subr.bf16.mxu0 0
    %494 = vmatpush1.bf16.xpose.msra.mxu0 0
    %495 = vmatprep.subr.bf16.mxu0 0
    %496 = vmatpush1.bf16.xpose.msra.mxu0 0
    %497 = vmatprep.subr.bf16.mxu0 0
    %498 = vmatpush1.bf16.xpose.msra.mxu0 0
    %499 = vmatprep.subr.bf16.mxu0 0
    %500 = vmatpush1.bf16.xpose.msra.mxu0 0
    %501 = vmatprep.subr.bf16.mxu0 0
    %502 = vmatpush1.bf16.xpose.msra.mxu0 0
    %503 = vmatprep.subr.bf16.mxu0 0
    %504 = vmatpush1.bf16.xpose.msra.mxu0 0
    %505 = vmatprep.subr.bf16.mxu0 0
    %506 = vmatpush1.bf16.xpose.msra.mxu0 0
    %507 = vmatprep.subr.bf16.mxu0 0
    %508 = vmatpush1.bf16.xpose.msra.mxu0 0
    %509 = vmatprep.subr.bf16.mxu0 0
    %510 = vmatpush1.bf16.xpose.msra.mxu0 0
    %511 = vmatprep.subr.bf16.mxu0 0
    %512 = vmatpush1.bf16.xpose.msra.mxu0 0
    %513 = vmatprep.subr.bf16.mxu0 0
    %514 = vmatpush1.bf16.xpose.msra.mxu0 0
    %515 = vmatprep.mubr.bf16.mxu0 0
    %516 = vmatmul.mubr.bf16.gmra.mrb[0].mxu0 %v478
    %v517 = vpop.f32.mrb[0].mxu0
    %v518 = vadd.f32 %v333, %v517
    %v519 = vpop.f32.mrb[0].mxu0
    %v520 = vpop.f32.mrb[0].mxu0
    %v521 = vadd.f32 %v334, %v520
    %v522 = vpop.f32.mrb[0].mxu0
    %523 = vdwg.mxu0
    %vm524 = vcmask 130048
    %v525 = vsel %vm524, %v377, -inf
    %526 = vmax.xlane.f32.xlu0 %v525
    %v527 = vpop.xlane.xlu0 %526
    %v528 = vsel %vm524, %v380, -inf
    %529 = vmax.xlane.f32.xlu0 %v528
    %v530 = vpop.xlane.xlu0 %529
    %v531 = vsel %vm524, %v424, -inf
    %532 = vmax.xlane.f32.xlu0 %v531
    %v533 = vpop.xlane.xlu0 %532
    %v534 = vsel %vm524, %v427, -inf
    %535 = vmax.xlane.f32.xlu0 %v534
    %v536 = vpop.xlane.xlu0 %535
    %v537 = vsel %vm524, %v471, -inf
    %538 = vmax.xlane.f32.xlu0 %v537
    %v539 = vpop.xlane.xlu0 %538
    %v540 = vsel %vm524, %v474, -inf
    %541 = vmax.xlane.f32.xlu0 %v540
    %v542 = vpop.xlane.xlu0 %541
    %v543 = vsel %vm524, %v518, -inf
    %544 = vmax.xlane.f32.xlu0 %v543
    %v545 = vpop.xlane.xlu0 %544
    %v546 = vsel %vm524, %v521, -inf
    %547 = vmax.xlane.f32.xlu0 %v546
    %v548 = vpop.xlane.xlu0 %547
    %v549 = vsub.f32 %v377, %v527
    %v550 = vsub.f32 %v380, %v530
    %v551 = vsub.f32 %v424, %v533
    %v552 = vsub.f32 %v427, %v536
    %v553 = vsub.f32 %v471, %v539
    %v554 = vsub.f32 %v474, %v542
    %v555 = vsub.f32 %v518, %v545
    %v556 = vsub.f32 %v521, %v548
    %v557 = vmul.f32 %v549, 1.442695
    %v558 = vpow.pop %v557
    %v559 = vmul.f32 %v550, 1.442695
    %v560 = vpow.pop %v559
    %v561 = vmul.f32 %v551, 1.442695
    %v562 = vpow.pop %v561
    %v563 = vmul.f32 %v552, 1.442695
    %v564 = vpow.pop %v563
    %v565 = vmul.f32 %v553, 1.442695
    %v566 = vpow.pop %v565
    %v567 = vmul.f32 %v554, 1.442695
    %v568 = vpow.pop %v567
    %v569 = vmul.f32 %v555, 1.442695
    %v570 = vpow.pop %v569
    %v571 = vmul.f32 %v556, 1.442695
    %v572 = vpow.pop %v571
    %v573 = vsel %vm524, %v558, 0.0
    %574 = vadd.xlane.f32.xlu0 %v573
    %v575 = vpop.xlane.xlu0 %574
    %v576 = vsel %vm524, %v560, 0.0
    %577 = vadd.xlane.f32.xlu0 %v576
    %v578 = vpop.xlane.xlu0 %577
    %v579 = vsel %vm524, %v562, 0.0
    %580 = vadd.xlane.f32.xlu0 %v579
    %v581 = vpop.xlane.xlu0 %580
    %v582 = vsel %vm524, %v564, 0.0
    %583 = vadd.xlane.f32.xlu0 %v582
    %v584 = vpop.xlane.xlu0 %583
    %v585 = vsel %vm524, %v566, 0.0
    %586 = vadd.xlane.f32.xlu0 %v585
    %v587 = vpop.xlane.xlu0 %586
    %v588 = vsel %vm524, %v568, 0.0
    %589 = vadd.xlane.f32.xlu0 %v588
    %v590 = vpop.xlane.xlu0 %589
    %v591 = vsel %vm524, %v570, 0.0
    %592 = vadd.xlane.f32.xlu0 %v591
    %v593 = vpop.xlane.xlu0 %592
    %v594 = vsel %vm524, %v572, 0.0
    %595 = vadd.xlane.f32.xlu0 %v594
    %v596 = vpop.xlane.xlu0 %595
    %v597 = vrcp.pop %v575
    %v598 = vrcp.pop %v578
    %v599 = vrcp.pop %v581
    %v600 = vrcp.pop %v584
    %v601 = vrcp.pop %v587
    %v602 = vrcp.pop %v590
    %v603 = vrcp.pop %v593
    %v604 = vrcp.pop %v596
    %v605 = vmul.f32 %v558, %v597
    %v606 = vmul.f32 %v560, %v598
    %v607 = vmul.f32 %v562, %v599
    %v608 = vmul.f32 %v564, %v600
    %v609 = vmul.f32 %v566, %v601
    %v610 = vmul.f32 %v568, %v602
    %v611 = vmul.f32 %v570, %v603
    %v612 = vmul.f32 %v572, %v604
    %v613 = vpack.c.bf16 %v606, %v605
    %v614 = vpack.c.bf16 %v608, %v607
    %v615 = vpack.c.bf16 %v610, %v609
    %v616 = vpack.c.bf16 %v612, %v611
    %v618 = vsel %vm524, %v613, 0
    %620 = vmatprep.subr.bf16.mxu0 0
    %621 = vmatpush1.bf16.msra.mxu0 %v329
    %622 = vmatprep.subr.bf16.mxu0 0
    %623 = vmatpush1.bf16.msra.mxu0 0
    %624 = vmatprep.subr.bf16.mxu0 0
    %625 = vmatpush1.bf16.msra.mxu0 0
    %626 = vmatprep.subr.bf16.mxu0 0
    %627 = vmatpush1.bf16.msra.mxu0 0
    %628 = vmatprep.subr.bf16.mxu0 0
    %629 = vmatpush1.bf16.msra.mxu0 0
    %630 = vmatprep.subr.bf16.mxu0 0
    %631 = vmatpush1.bf16.msra.mxu0 0
    %632 = vmatprep.subr.bf16.mxu0 0
    %633 = vmatpush1.bf16.msra.mxu0 0
    %634 = vmatprep.subr.bf16.mxu0 0
    %635 = vmatpush1.bf16.msra.mxu0 0
    %636 = vmatprep.subr.bf16.mxu0 0
    %637 = vmatpush1.bf16.msra.mxu0 0
    %638 = vmatprep.subr.bf16.mxu0 0
    %639 = vmatpush1.bf16.msra.mxu0 0
    %640 = vmatprep.subr.bf16.mxu0 0
    %641 = vmatpush1.bf16.msra.mxu0 0
    %642 = vmatprep.subr.bf16.mxu0 0
    %643 = vmatpush1.bf16.msra.mxu0 0
    %644 = vmatprep.subr.bf16.mxu0 0
    %645 = vmatpush1.bf16.msra.mxu0 0
    %646 = vmatprep.subr.bf16.mxu0 0
    %647 = vmatpush1.bf16.msra.mxu0 0
    %648 = vmatprep.subr.bf16.mxu0 0
    %649 = vmatpush1.bf16.msra.mxu0 0
    %650 = vmatprep.subr.bf16.mxu0 0
    %651 = vmatpush1.bf16.msra.mxu0 0
    %652 = vmatprep.mubr.bf16.mxu0 0
    %653 = vmatmul.mubr.bf16.gmra.mrb[0].mxu0 %v618
    %v654 = vpop.f32.mrb[0].mxu0
    %v655 = vadd.f32 0.0, %v654
    %v656 = vpop.f32.mrb[0].mxu0
    %v657 = vpop.f32.mrb[0].mxu0
    %v658 = vadd.f32 0.0, %v657
    %v659 = vpop.f32.mrb[0].mxu0
    %660 = vdwg.mxu0
    %v662 = vsel %vm524, %v614, 0
    %664 = vmatprep.subr.bf16.mxu0 0
    %665 = vmatpush1.bf16.msra.mxu0 %v330
    %666 = vmatprep.subr.bf16.mxu0 0
    %667 = vmatpush1.bf16.msra.mxu0 0
    %668 = vmatprep.subr.bf16.mxu0 0
    %669 = vmatpush1.bf16.msra.mxu0 0
    %670 = vmatprep.subr.bf16.mxu0 0
    %671 = vmatpush1.bf16.msra.mxu0 0
    %672 = vmatprep.subr.bf16.mxu0 0
    %673 = vmatpush1.bf16.msra.mxu0 0
    %674 = vmatprep.subr.bf16.mxu0 0
    %675 = vmatpush1.bf16.msra.mxu0 0
    %676 = vmatprep.subr.bf16.mxu0 0
    %677 = vmatpush1.bf16.msra.mxu0 0
    %678 = vmatprep.subr.bf16.mxu0 0
    %679 = vmatpush1.bf16.msra.mxu0 0
    %680 = vmatprep.subr.bf16.mxu0 0
    %681 = vmatpush1.bf16.msra.mxu0 0
    %682 = vmatprep.subr.bf16.mxu0 0
    %683 = vmatpush1.bf16.msra.mxu0 0
    %684 = vmatprep.subr.bf16.mxu0 0
    %685 = vmatpush1.bf16.msra.mxu0 0
    %686 = vmatprep.subr.bf16.mxu0 0
    %687 = vmatpush1.bf16.msra.mxu0 0
    %688 = vmatprep.subr.bf16.mxu0 0
    %689 = vmatpush1.bf16.msra.mxu0 0
    %690 = vmatprep.subr.bf16.mxu0 0
    %691 = vmatpush1.bf16.msra.mxu0 0
    %692 = vmatprep.subr.bf16.mxu0 0
    %693 = vmatpush1.bf16.msra.mxu0 0
    %694 = vmatprep.subr.bf16.mxu0 0
    %695 = vmatpush1.bf16.msra.mxu0 0
    %696 = vmatprep.mubr.bf16.mxu0 0
    %697 = vmatmul.mubr.bf16.gmra.mrb[0].mxu0 %v662
    %v698 = vpop.f32.mrb[0].mxu0
    %v699 = vadd.f32 0.0, %v698
    %v700 = vpop.f32.mrb[0].mxu0
    %v701 = vpop.f32.mrb[0].mxu0
    %v702 = vadd.f32 0.0, %v701
    %v703 = vpop.f32.mrb[0].mxu0
    %704 = vdwg.mxu0
    %v706 = vsel %vm524, %v615, 0
    %708 = vmatprep.subr.bf16.mxu0 0
    %709 = vmatpush1.bf16.msra.mxu0 %v331
    %710 = vmatprep.subr.bf16.mxu0 0
    %711 = vmatpush1.bf16.msra.mxu0 0
    %712 = vmatprep.subr.bf16.mxu0 0
    %713 = vmatpush1.bf16.msra.mxu0 0
    %714 = vmatprep.subr.bf16.mxu0 0
    %715 = vmatpush1.bf16.msra.mxu0 0
    %716 = vmatprep.subr.bf16.mxu0 0
    %717 = vmatpush1.bf16.msra.mxu0 0
    %718 = vmatprep.subr.bf16.mxu0 0
    %719 = vmatpush1.bf16.msra.mxu0 0
    %720 = vmatprep.subr.bf16.mxu0 0
    %721 = vmatpush1.bf16.msra.mxu0 0
    %722 = vmatprep.subr.bf16.mxu0 0
    %723 = vmatpush1.bf16.msra.mxu0 0
    %724 = vmatprep.subr.bf16.mxu0 0
    %725 = vmatpush1.bf16.msra.mxu0 0
    %726 = vmatprep.subr.bf16.mxu0 0
    %727 = vmatpush1.bf16.msra.mxu0 0
    %728 = vmatprep.subr.bf16.mxu0 0
    %729 = vmatpush1.bf16.msra.mxu0 0
    %730 = vmatprep.subr.bf16.mxu0 0
    %731 = vmatpush1.bf16.msra.mxu0 0
    %732 = vmatprep.subr.bf16.mxu0 0
    %733 = vmatpush1.bf16.msra.mxu0 0
    %734 = vmatprep.subr.bf16.mxu0 0
    %735 = vmatpush1.bf16.msra.mxu0 0
    %736 = vmatprep.subr.bf16.mxu0 0
    %737 = vmatpush1.bf16.msra.mxu0 0
    %738 = vmatprep.subr.bf16.mxu0 0
    %739 = vmatpush1.bf16.msra.mxu0 0
    %740 = vmatprep.mubr.bf16.mxu0 0
    %741 = vmatmul.mubr.bf16.gmra.mrb[0].mxu0 %v706
    %v742 = vpop.f32.mrb[0].mxu0
    %v743 = vadd.f32 0.0, %v742
    %v744 = vpop.f32.mrb[0].mxu0
    %v745 = vpop.f32.mrb[0].mxu0
    %v746 = vadd.f32 0.0, %v745
    %v747 = vpop.f32.mrb[0].mxu0
    %748 = vdwg.mxu0
    %v750 = vsel %vm524, %v616, 0
    %752 = vmatprep.subr.bf16.mxu0 0
    %753 = vmatpush1.bf16.msra.mxu0 %v332
    %754 = vmatprep.subr.bf16.mxu0 0
    %755 = vmatpush1.bf16.msra.mxu0 0
    %756 = vmatprep.subr.bf16.mxu0 0
    %757 = vmatpush1.bf16.msra.mxu0 0
    %758 = vmatprep.subr.bf16.mxu0 0
    %759 = vmatpush1.bf16.msra.mxu0 0
    %760 = vmatprep.subr.bf16.mxu0 0
    %761 = vmatpush1.bf16.msra.mxu0 0
    %762 = vmatprep.subr.bf16.mxu0 0
    %763 = vmatpush1.bf16.msra.mxu0 0
    %764 = vmatprep.subr.bf16.mxu0 0
    %765 = vmatpush1.bf16.msra.mxu0 0
    %766 = vmatprep.subr.bf16.mxu0 0
    %767 = vmatpush1.bf16.msra.mxu0 0
    %768 = vmatprep.subr.bf16.mxu0 0
    %769 = vmatpush1.bf16.msra.mxu0 0
    %770 = vmatprep.subr.bf16.mxu0 0
    %771 = vmatpush1.bf16.msra.mxu0 0
    %772 = vmatprep.subr.bf16.mxu0 0
    %773 = vmatpush1.bf16.msra.mxu0 0
    %774 = vmatprep.subr.bf16.mxu0 0
    %775 = vmatpush1.bf16.msra.mxu0 0
    %776 = vmatprep.subr.bf16.mxu0 0
    %777 = vmatpush1.bf16.msra.mxu0 0
    %778 = vmatprep.subr.bf16.mxu0 0
    %779 = vmatpush1.bf16.msra.mxu0 0
    %780 = vmatprep.subr.bf16.mxu0 0
    %781 = vmatpush1.bf16.msra.mxu0 0
    %782 = vmatprep.subr.bf16.mxu0 0
    %783 = vmatpush1.bf16.msra.mxu0 0
    %784 = vmatprep.mubr.bf16.mxu0 0
    %785 = vmatmul.mubr.bf16.gmra.mrb[0].mxu0 %v750
    %v786 = vpop.f32.mrb[0].mxu0
    %v787 = vadd.f32 0.0, %v786
    %v788 = vpop.f32.mrb[0].mxu0
    %v789 = vpop.f32.mrb[0].mxu0
    %v790 = vadd.f32 0.0, %v789
    %v791 = vpop.f32.mrb[0].mxu0
    %792 = vdwg.mxu0
    %795 = vrot.lane.b32.xlu0 %v699, 8
    %v796 = vpop.permute.xlu0 %795
    %797 = vrot.lane.b32.xlu0 %v702, 8
    %v798 = vpop.permute.xlu0 %797
    %803 = vrot.lane.b32.xlu0 %v743, 16
    %v804 = vpop.permute.xlu0 %803
    %805 = vrot.lane.b32.xlu0 %v746, 16
    %v806 = vpop.permute.xlu0 %805
    %811 = vrot.lane.b32.xlu0 %v787, 24
    %v812 = vpop.permute.xlu0 %811
    %813 = vrot.lane.b32.xlu0 %v790, 24
    %v814 = vpop.permute.xlu0 %813
    %v817 = vsel %vm335, %v655, %v796
    %v818 = vsel %vm335, %v658, %v798
    %v819 = vsel %vm524, %v817, %v804
    %v820 = vsel %vm524, %v818, %v806
    %vm821 = vcmask 195584
    %v822 = vsel %vm821, %v819, %v812
    %v823 = vsel %vm821, %v820, %v814
    %v824 = vpack.c.bf16 %v823, %v822
    %v825 = vld [vmem:[#allocation7] sm:$0xf]
    %v826 = vld [vmem:[#allocation7 + $0x4] sm:$0xf]
    %v827 = vld [vmem:[#allocation7 + $0x8] sm:$0xf]
    %v828 = vld [vmem:[#allocation7 + $0xc] sm:$0xf]
    %v829 = vld [vmem:[%s3] sm:$0x1]
    %v831 = vlaneseq
    %v832 = vshrl.u32 %v831, 7
    %v833 = vsub.s32 0, %v832
    %v834 = vrot.slane %v829, %v833
    %v840 = vunpack.c.l.b16 %v825
    %v841 = vunpack.c.l.b16 %v826
    %v842 = vunpack.c.l.b16 %v827
    %v843 = vunpack.c.l.b16 %v828
    %v844 = vpack.c.b16 %v841, %v840
    %v845 = vpack.c.b16 %v843, %v842
    %v849 = vsel %vm100, %v824, 0
    %851 = vmatprep.subr.bf16.mxu0 0
    %852 = vmatpush1.bf16.msra.mxu0 %v844
    %853 = vmatprep.subr.bf16.mxu0 0
    %854 = vmatpush1.bf16.msra.mxu0 %v845
    %855 = vmatprep.subr.bf16.mxu0 0
    %856 = vmatpush1.bf16.msra.mxu0 0
    %857 = vmatprep.subr.bf16.mxu0 0
    %858 = vmatpush1.bf16.msra.mxu0 0
    %859 = vmatprep.subr.bf16.mxu0 0
    %860 = vmatpush1.bf16.msra.mxu0 0
    %861 = vmatprep.subr.bf16.mxu0 0
    %862 = vmatpush1.bf16.msra.mxu0 0
    %863 = vmatprep.subr.bf16.mxu0 0
    %864 = vmatpush1.bf16.msra.mxu0 0
    %865 = vmatprep.subr.bf16.mxu0 0
    %866 = vmatpush1.bf16.msra.mxu0 0
    %867 = vmatprep.subr.bf16.mxu0 0
    %868 = vmatpush1.bf16.msra.mxu0 0
    %869 = vmatprep.subr.bf16.mxu0 0
    %870 = vmatpush1.bf16.msra.mxu0 0
    %871 = vmatprep.subr.bf16.mxu0 0
    %872 = vmatpush1.bf16.msra.mxu0 0
    %873 = vmatprep.subr.bf16.mxu0 0
    %874 = vmatpush1.bf16.msra.mxu0 0
    %875 = vmatprep.subr.bf16.mxu0 0
    %876 = vmatpush1.bf16.msra.mxu0 0
    %877 = vmatprep.subr.bf16.mxu0 0
    %878 = vmatpush1.bf16.msra.mxu0 0
    %879 = vmatprep.subr.bf16.mxu0 0
    %880 = vmatpush1.bf16.msra.mxu0 0
    %881 = vmatprep.subr.bf16.mxu0 0
    %882 = vmatpush1.bf16.msra.mxu0 0
    %883 = vmatprep.mubr.bf16.mxu0 0
    %884 = vmatmul.mubr.bf16.gmra.mrb[0].mxu0 %v849
    %v885 = vpop.f32.mrb[0].mxu0
    %v886 = vadd.f32 %v834, %v885
    %v887 = vpop.f32.mrb[0].mxu0
    %v888 = vpop.f32.mrb[0].mxu0
    %v889 = vadd.f32 %v834, %v888
    %v890 = vpop.f32.mrb[0].mxu0
    %891 = vdwg.mxu0
    %892 = vst.msk [vmem:[#allocation10] sm:$0xff] %vm100, %v886
    %893 = vst.msk [vmem:[#allocation10 + $0x8] sm:$0xff] %vm100, %v889
    // Predicated region
    $region38: #{tpu_custom_call.1} parent=1 // pred_check
      _
    $region39: #{tpu_custom_call.1} parent=1 // pred_check_branch
      %895 = sbr.rel (0) target = $region41
    $region40: #{tpu_custom_call.1} parent=1 // pred_region
      %s897 = ssub.s32 256, 256
      %898 = vsyncadd [#allocation4], %s897
      %s899 = sshll.u32 [#allocation10], 4
      %s900 = int_to_ptr.vmem [resolvable:$true] %s899
      %905 = dma.vmem_to_hbm [thread:$0]  %s900, 256, %s5, [#allocation4], 128, 128, 8
    $region41: #{tpu_custom_call.1} parent=1 // pred_fallthru
      _
    // Predicated region
    $region42: #{tpu_custom_call.1} parent=1 // pred_check
      _
    $region43: #{tpu_custom_call.1} parent=1 // pred_check_branch
      %907 = sbr.rel (0) target = $region45
    $region44: #{tpu_custom_call.1} parent=1 // pred_region
      %908 = dma.done [#allocation4], 256
    $region45: #{tpu_custom_call.1} parent=1 // pred_fallthru
      _
    %909 = vsyncpa [#allocation3], 1
    %910 = vsyncpa [#allocation6], 1
    %911 = vsyncpa [#allocation9], 1
    %912 = vsyncpa [#allocation4], 1

</llo_original>
